<compile_context>
chip_gen: v7x
topology: tpu7x:2x2x1
jax: 0.10.0
libtpu: 0.0.40
codegen_flags: <defaults>
</compile_context>

<pallas_src>
import jax
import jax.numpy as jnp
from jax import lax
from jax.experimental import pallas as pl
from jax.experimental.pallas import tpu as pltpu


# ---------------------------------------------------------------------------
# Primary path: true zero-cost identity (no Pallas op at all).
# ---------------------------------------------------------------------------
def selection_features(coords, features):
    """SelectionFeatures.forward((coords, features)) — pure identity.

    Per the performance review, the correct zero-cost implementation is to
    return the inputs unchanged: any pallas_call here would only add a custom
    call launch and (without donated buffers) a hidden defensive HBM copy.
    """
    # TODO(synk): PyTorch forward() also does a host-side print() of the input
    # tuple; that side effect is deliberately omitted (it would force a
    # device->host sync for no functional effect).
    return coords, features


# ---------------------------------------------------------------------------
# Materializing path: fresh copies via direct HBM->HBM DMA (no VMEM bounce).
# ---------------------------------------------------------------------------
def _hbm_copy_kernel(coords_hbm, feats_hbm, coords_out, feats_out, sems):
    # Raw HBM refs in and out: one DMA descriptor per array, started back-to-back
    # so both copies are in flight concurrently, then waited on.  No BlockSpec
    # pipelining, no VMEM staging, no grid — runs at the DMA/HBM roofline on
    # every TPU generation.
    cp_coords = pltpu.make_async_copy(coords_hbm, coords_out, sems.at[0])
    cp_feats = pltpu.make_async_copy(feats_hbm, feats_out, sems.at[1])
    cp_coords.start()
    cp_feats.start()
    cp_coords.wait()
    cp_feats.wait()


def selection_features_copy(coords, features):
    """Bit-identical materializing copy of (coords, features) into fresh buffers.

    Only needed when the caller requires new device buffers; the module's
    forward() itself uses the zero-cost identity above.
    """
    # Degenerate sizes: nothing to copy — avoid issuing zero-length DMAs.
    if coords.size == 0 or features.size == 0:
        return coords, features

    out_coords, out_feats = pl.pallas_call(
        _hbm_copy_kernel,
        out_shape=(
            jax.ShapeDtypeStruct(coords.shape, coords.dtype),
            jax.ShapeDtypeStruct(features.shape, features.dtype),
        ),
        # Inputs and outputs stay in HBM; the kernel moves the bytes itself.
        in_specs=[
            pl.BlockSpec(memory_space=pl.ANY),
            pl.BlockSpec(memory_space=pl.ANY),
        ],
        out_specs=(
            pl.BlockSpec(memory_space=pl.ANY),
            pl.BlockSpec(memory_space=pl.ANY),
        ),
        scratch_shapes=[pltpu.SemaphoreType.DMA((2,))],
    )(coords, features)
    return out_coords, out_feats


# ---------------------------------------------------------------------------
# Module wrapper (mirrors SelectionFeatures(dimension, spatial_size)).
# ---------------------------------------------------------------------------
class SelectionFeaturesPallas:
    """Mirrors SelectionFeatures(dimension, spatial_size); forward is identity."""

    def __init__(self, dimension, spatial_size):
        # scn.InputLayer(dimension, spatial_size, mode=3) holds no learnable
        # parameters and is unused in forward(); nothing to initialize.
        self.dimension = dimension
        self.spatial_size = spatial_size

    def forward(self, inputs):
        coords, features = inputs
        return selection_features(coords, features)


if __name__ == "__main__":
    key = jax.random.PRNGKey(0)
    k1, k2 = jax.random.split(key)

    dimension = 3
    spatial_size = 16
    n_points = 16       # number of active sparse voxels
    n_channels = 4      # feature channels per voxel

    # coords: [N, dimension + 1] int32 (x, y, z, batch_idx)
    coords = jax.random.randint(
        k1, (n_points, dimension + 1), minval=0, maxval=spatial_size, dtype=jnp.int32
    )
    # features: [N, C] float32
    features = jax.random.normal(k2, (n_points, n_channels), dtype=jnp.float32)

    # Primary path: pure identity, zero device work.
    module = SelectionFeaturesPallas(dimension, spatial_size)
    out_coords, out_feats = module.forward((coords, features))
    jax.block_until_ready((out_coords, out_feats))

    assert out_coords.shape == coords.shape and out_coords.dtype == coords.dtype
    assert out_feats.shape == features.shape and out_feats.dtype == features.dtype
    assert bool(jnp.all(out_coords == coords))
    assert bool(jnp.all(out_feats == features))

    # Materializing path: Pallas HBM->HBM DMA copy — validate bit-identity.
    cc, ff = selection_features_copy(coords, features)
    jax.block_until_ready((cc, ff))
    assert cc.shape == coords.shape and cc.dtype == coords.dtype
    assert ff.shape == features.shape and ff.dtype == features.dtype
    assert bool(jnp.all(cc == coords))
    assert bool(jnp.all(
        lax.bitcast_convert_type(ff, jnp.uint32)
        == lax.bitcast_convert_type(features, jnp.uint32)))

    print("KERNEL_OK")
</pallas_src>

<mosaic_0001>
module attributes {stable_mosaic.version = 11 : i64} {
  func.func @_hbm_copy_kernel(%arg0: memref<16x4xi32, #tpu.memory_space<any>>, %arg1: memref<16x4xf32, #tpu.memory_space<any>>, %arg2: memref<16x4xi32, #tpu.memory_space<any>>, %arg3: memref<16x4xf32, #tpu.memory_space<any>>, %arg4: memref<2x!tpu.dma_semaphore, #tpu.memory_space<semaphore_mem>>) attributes {dimension_semantics = [], scalar_prefetch = 0 : i64, scratch_operands = 1 : i64, tpu.core_type = #tpu.core_type<tc>} {
    %c0_i32 = arith.constant 0 : i32
    %0 = tpu.memref_slice %arg4[%c0_i32] : memref<2x!tpu.dma_semaphore, #tpu.memory_space<semaphore_mem>> -> memref<1x!tpu.dma_semaphore, #tpu.memory_space<semaphore_mem>>
    %1 = tpu.memref_squeeze %0 : memref<1x!tpu.dma_semaphore, #tpu.memory_space<semaphore_mem>> -> memref<!tpu.dma_semaphore, #tpu.memory_space<semaphore_mem>>
    tpu.enqueue_dma source(%arg0 : memref<16x4xi32, #tpu.memory_space<any>>) target(%arg2 : memref<16x4xi32, #tpu.memory_space<any>>) target_semaphore(%1 : memref<!tpu.dma_semaphore, #tpu.memory_space<semaphore_mem>>)
    %c1_i32 = arith.constant 1 : i32
    %2 = tpu.memref_slice %arg4[%c1_i32] : memref<2x!tpu.dma_semaphore, #tpu.memory_space<semaphore_mem>> -> memref<1x!tpu.dma_semaphore, #tpu.memory_space<semaphore_mem>>
    %3 = tpu.memref_squeeze %2 : memref<1x!tpu.dma_semaphore, #tpu.memory_space<semaphore_mem>> -> memref<!tpu.dma_semaphore, #tpu.memory_space<semaphore_mem>>
    tpu.enqueue_dma source(%arg1 : memref<16x4xf32, #tpu.memory_space<any>>) target(%arg3 : memref<16x4xf32, #tpu.memory_space<any>>) target_semaphore(%3 : memref<!tpu.dma_semaphore, #tpu.memory_space<semaphore_mem>>)
    %c0_i32_0 = arith.constant 0 : i32
    %4 = tpu.memref_slice %arg4[%c0_i32_0] : memref<2x!tpu.dma_semaphore, #tpu.memory_space<semaphore_mem>> -> memref<1x!tpu.dma_semaphore, #tpu.memory_space<semaphore_mem>>
    %5 = tpu.memref_squeeze %4 : memref<1x!tpu.dma_semaphore, #tpu.memory_space<semaphore_mem>> -> memref<!tpu.dma_semaphore, #tpu.memory_space<semaphore_mem>>
    tpu.wait_dma2 semaphore(%5 : memref<!tpu.dma_semaphore, #tpu.memory_space<semaphore_mem>>) src(%arg0 : memref<16x4xi32, #tpu.memory_space<any>>) dst(%arg2 : memref<16x4xi32, #tpu.memory_space<any>>)
    %c1_i32_1 = arith.constant 1 : i32
    %6 = tpu.memref_slice %arg4[%c1_i32_1] : memref<2x!tpu.dma_semaphore, #tpu.memory_space<semaphore_mem>> -> memref<1x!tpu.dma_semaphore, #tpu.memory_space<semaphore_mem>>
    %7 = tpu.memref_squeeze %6 : memref<1x!tpu.dma_semaphore, #tpu.memory_space<semaphore_mem>> -> memref<!tpu.dma_semaphore, #tpu.memory_space<semaphore_mem>>
    tpu.wait_dma2 semaphore(%7 : memref<!tpu.dma_semaphore, #tpu.memory_space<semaphore_mem>>) src(%arg1 : memref<16x4xf32, #tpu.memory_space<any>>) dst(%arg3 : memref<16x4xf32, #tpu.memory_space<any>>)
    return
  }
}

</mosaic_0001>

<llo_original>
// kernel: tpu_custom_call.1
$region0: #{tpu_custom_call.1}
  #allocation0 [shape = 'u32[]', space=smem, size = 0x4, offset = 0x4, fixed_abs, tag = 'smem constant byte address 0x4 - core index']
  #allocation1 [shape = 'u32[144,128]{1,0:T(1,128)}', space=vmem, size = 0x12000, scoped, tag = 'internal scratch']
  #allocation2 [shape = 's32[2]{0}', space=sflag, size = 0x8, scoped, tag = 'scratch operand']
  #allocation3 [shape = 's32[]', space=sflag, size = 0x4, offset = 0, fixed_abs, tag = 'sflag constant byte address 0x0 - dummy sync flag']
  #allocation4 [shape = 's32[]', space=sflag, size = 0x4, offset = 0, fixed_abs, tag = 'sflag constant byte address 0x0 - dummy sync flag']
  %s0 = inlined_call_operand.vmem [shape: s32[16,4], index: 0, kind: input, shape index: {}]
  %s1 = inlined_call_operand.vmem [shape: f32[16,4], index: 1, kind: input, shape index: {}]
  %s2 = inlined_call_operand.vmem [shape: s32[16,4], index: 2, kind: output, shape index: {0}]
  %s3 = inlined_call_operand.vmem [shape: f32[16,4], index: 3, kind: output, shape index: {1}]
  %4 = xla_tuple %s2, %s3
  %s5 = sld [smem:[#allocation0]]
  $region70: #{tpu_custom_call.1} parent=0
    _
  %s7 = ssub.s32 1, %s5
  %s8 = scalar_select 0, %s7, %s5
  %p10 = scmp.lt.u32.totalorder 16, 8
  %p11 = pneg %p10
  // Predicated region
  $region2: #{tpu_custom_call.1} parent=0 // pred_check
    _
  $region3: #{tpu_custom_call.1} parent=0 // pred_check_branch
    %13 = sbr.rel (%p10) target = $region5
  $region4: #{tpu_custom_call.1} parent=0 // pred_region
    %s28 = sand.u32 16, 7
    %p29 = scmp.eq.s32.totalorder %s28, 0
    // Predicated region
    $region17: #{tpu_custom_call.1} parent=4 // pred_check
      %p30 = pneg %p29
    $region18: #{tpu_custom_call.1} parent=4 // pred_check_branch
      %32 = sbr.rel (%p30) target = $region20
    $region19: #{tpu_custom_call.1} parent=4 // pred_region
      loop: start=0, step=1, limit=1
      $region21: #{tpu_custom_call.1} parent=19 // loop_pre_header
        _
      $region22: #{tpu_custom_call.1} parent=19 // loop_header
        %s34 = sphi 0, %s38
        %p35 = scmp.ge.s32.totalorder %s34, 1
        %s39 = sphi %s0, %s0
        %s40 = sphi %s2, %s2
      $region23: #{tpu_custom_call.1} parent=19 // loop_header_branch
        %37 = sbr.rel (%p35) target = $region27
      $region24: #{tpu_custom_call.1} parent=19 // loop_body
        %v41 = vld [vmem:[%s39] sm:$0xff]
        %42 = vst [vmem:[%s40] sm:$0xff] %v41
        %v43 = vld [vmem:[%s39 + $0x8] sm:$0xff]
        %44 = vst [vmem:[%s40 + $0x8] sm:$0xff] %v43
      $region25: #{tpu_custom_call.1} parent=19 // loop_footer
        %s38 = sadd.s32 1, %s34
      $region26: #{tpu_custom_call.1} parent=19 // loop_footer_branch
        %33 = sbr.rel target = $region22
      $region27: #{tpu_custom_call.1} parent=19 // loop_exit
        _
    $region20: #{tpu_custom_call.1} parent=4 // pred_fallthru
      _
    %p45 = pneg %p29
    // Predicated region
    $region28: #{tpu_custom_call.1} parent=4 // pred_check
      _
    $region29: #{tpu_custom_call.1} parent=4 // pred_check_branch
      %47 = sbr.rel (%p29) target = $region31
    $region30: #{tpu_custom_call.1} parent=4 // pred_region
      %s48 = sand.u32 16, 7
    $region31: #{tpu_custom_call.1} parent=4 // pred_fallthru
      _
  $region5: #{tpu_custom_call.1} parent=0 // pred_fallthru
    _
  // Predicated region
  $region6: #{tpu_custom_call.1} parent=0 // pred_check
    %p14 = pneg %p10
  $region7: #{tpu_custom_call.1} parent=0 // pred_check_branch
    %16 = sbr.rel (%p14) target = $region9
  $region8: #{tpu_custom_call.1} parent=0 // pred_region
    %s17 = sshllo.u32 0, 16
    loop: start=0, step=1, limit=1
    $region10: #{tpu_custom_call.1} parent=8 // loop_pre_header
      _
    $region11: #{tpu_custom_call.1} parent=8 // loop_header
      %s19 = sphi 0, %s23
      %p20 = scmp.ge.s32.totalorder %s19, 1
      %s24 = sphi %s0, %s0
      %s25 = sphi %s2, %s2
    $region12: #{tpu_custom_call.1} parent=8 // loop_header_branch
      %22 = sbr.rel (%p20) target = $region16
    $region13: #{tpu_custom_call.1} parent=8 // loop_body
      %v26 = vld [vmem:[%s24] sm:%s17]
      %27 = vst [vmem:[%s25] sm:%s17] %v26
    $region14: #{tpu_custom_call.1} parent=8 // loop_footer
      %s23 = sadd.s32 1, %s19
    $region15: #{tpu_custom_call.1} parent=8 // loop_footer_branch
      %18 = sbr.rel target = $region11
    $region16: #{tpu_custom_call.1} parent=8 // loop_exit
      _
  $region9: #{tpu_custom_call.1} parent=0 // pred_fallthru
    _
  // Predicated region
  $region32: #{tpu_custom_call.1} parent=0 // pred_check
    _
  $region33: #{tpu_custom_call.1} parent=0 // pred_check_branch
    %51 = sbr.rel (0) target = $region35
  $region34: #{tpu_custom_call.1} parent=0 // pred_region
    %52 = vsyncadd [#allocation2], 256
  $region35: #{tpu_custom_call.1} parent=0 // pred_fallthru
    _
  %s53 = scalar_lea.sflag [#allocation2], 1
  %p55 = scmp.lt.u32.totalorder 16, 8
  %p56 = pneg %p55
  // Predicated region
  $region36: #{tpu_custom_call.1} parent=0 // pred_check
    _
  $region37: #{tpu_custom_call.1} parent=0 // pred_check_branch
    %58 = sbr.rel (%p55) target = $region39
  $region38: #{tpu_custom_call.1} parent=0 // pred_region
    %s73 = sand.u32 16, 7
    %p74 = scmp.eq.s32.totalorder %s73, 0
    // Predicated region
    $region51: #{tpu_custom_call.1} parent=38 // pred_check
      %p75 = pneg %p74
    $region52: #{tpu_custom_call.1} parent=38 // pred_check_branch
      %77 = sbr.rel (%p75) target = $region54
    $region53: #{tpu_custom_call.1} parent=38 // pred_region
      loop: start=0, step=1, limit=1
      $region55: #{tpu_custom_call.1} parent=53 // loop_pre_header
        _
      $region56: #{tpu_custom_call.1} parent=53 // loop_header
        %s79 = sphi 0, %s83
        %p80 = scmp.ge.s32.totalorder %s79, 1
        %s84 = sphi %s1, %s1
        %s85 = sphi %s3, %s3
      $region57: #{tpu_custom_call.1} parent=53 // loop_header_branch
        %82 = sbr.rel (%p80) target = $region61
      $region58: #{tpu_custom_call.1} parent=53 // loop_body
        %v86 = vld [vmem:[%s84] sm:$0xff]
        %87 = vst [vmem:[%s85] sm:$0xff] %v86
        %v88 = vld [vmem:[%s84 + $0x8] sm:$0xff]
        %89 = vst [vmem:[%s85 + $0x8] sm:$0xff] %v88
      $region59: #{tpu_custom_call.1} parent=53 // loop_footer
        %s83 = sadd.s32 1, %s79
      $region60: #{tpu_custom_call.1} parent=53 // loop_footer_branch
        %78 = sbr.rel target = $region56
      $region61: #{tpu_custom_call.1} parent=53 // loop_exit
        _
    $region54: #{tpu_custom_call.1} parent=38 // pred_fallthru
      _
    %p90 = pneg %p74
    // Predicated region
    $region62: #{tpu_custom_call.1} parent=38 // pred_check
      _
    $region63: #{tpu_custom_call.1} parent=38 // pred_check_branch
      %92 = sbr.rel (%p74) target = $region65
    $region64: #{tpu_custom_call.1} parent=38 // pred_region
      %s93 = sand.u32 16, 7
    $region65: #{tpu_custom_call.1} parent=38 // pred_fallthru
      _
  $region39: #{tpu_custom_call.1} parent=0 // pred_fallthru
    _
  // Predicated region
  $region40: #{tpu_custom_call.1} parent=0 // pred_check
    %p59 = pneg %p55
  $region41: #{tpu_custom_call.1} parent=0 // pred_check_branch
    %61 = sbr.rel (%p59) target = $region43
  $region42: #{tpu_custom_call.1} parent=0 // pred_region
    %s62 = sshllo.u32 0, 16
    loop: start=0, step=1, limit=1
    $region44: #{tpu_custom_call.1} parent=42 // loop_pre_header
      _
    $region45: #{tpu_custom_call.1} parent=42 // loop_header
      %s64 = sphi 0, %s68
      %p65 = scmp.ge.s32.totalorder %s64, 1
      %s69 = sphi %s1, %s1
      %s70 = sphi %s3, %s3
    $region46: #{tpu_custom_call.1} parent=42 // loop_header_branch
      %67 = sbr.rel (%p65) target = $region50
    $region47: #{tpu_custom_call.1} parent=42 // loop_body
      %v71 = vld [vmem:[%s69] sm:%s62]
      %72 = vst [vmem:[%s70] sm:%s62] %v71
    $region48: #{tpu_custom_call.1} parent=42 // loop_footer
      %s68 = sadd.s32 1, %s64
    $region49: #{tpu_custom_call.1} parent=42 // loop_footer_branch
      %63 = sbr.rel target = $region45
    $region50: #{tpu_custom_call.1} parent=42 // loop_exit
      _
  $region43: #{tpu_custom_call.1} parent=0 // pred_fallthru
    _
  // Predicated region
  $region66: #{tpu_custom_call.1} parent=0 // pred_check
    _
  $region67: #{tpu_custom_call.1} parent=0 // pred_check_branch
    %96 = sbr.rel (0) target = $region69
  $region68: #{tpu_custom_call.1} parent=0 // pred_region
    %97 = vsyncadd %s53, 256
  $region69: #{tpu_custom_call.1} parent=0 // pred_fallthru
    _
  %s98 = smul.u32 16, 1
  %s99 = sshll.u32 %s98, 4
  %100 = dma.done [#allocation2], %s99
  %s101 = sshll.u32 %s98, 4
  %102 = dma.done %s53, %s101
  %103 = vsyncmov [#allocation2]
  %s104 = vpop.sfrf %103
  %p105 = scmp.eq.s32.totalorder %s104, 0
  %p106 = pneg %p105
  %108 = shalt.err (%p106)
  %s109 = scalar_lea.sflag [#allocation2], 1
  %110 = vsyncmov %s109
  %s111 = vpop.sfrf %110
  %p112 = scmp.eq.s32.totalorder %s111, 0
  %p113 = pneg %p112
  %115 = shalt.err (%p113)

</llo_original>
